<compile_context>
chip_gen: v5e
topology: v5e:2x2
jax: 0.10.0
libtpu: 0.0.40
codegen_flags: <defaults>
</compile_context>

<pallas_src>
import functools

import jax
import jax.numpy as jnp
from jax.experimental import pallas as pl
from jax.experimental.pallas import tpu as pltpu


_TARGET_TILE = 512      # lane-dim tile target (good DMA/MXU size on v5e/v6e/v7x)
_MAX_SINGLE_K = 1024    # K dims up to this run as a single (scratch-free) step


def _round_up(x, m):
    return (x + m - 1) // m * m


# ---------------------------------------------------------------------------
# Padding / tiling policy.  prepare_params() pads with these; _linear()
# recovers the identical tile from the padded dim, so the two always agree.
# ---------------------------------------------------------------------------
def _pad_n(dim):
    """Pad an output (lane) dim so its tile is large AND there are >=2 tiles
    whenever the dim allows it (keeps both v7x TensorCores busy)."""
    d = _round_up(dim, 128)
    if d >= 2 * _TARGET_TILE:
        return _round_up(dim, _TARGET_TILE)
    if d > 128:
        half = _round_up((d + 1) // 2, 128)
        return 2 * half
    return d


def _tile_n(padded):
    if padded >= 2 * _TARGET_TILE:
        return _TARGET_TILE
    if padded > 128:
        return padded // 2
    return padded


def _pad_k(dim):
    d = _round_up(dim, 128)
    if d <= _MAX_SINGLE_K:
        return d
    return _round_up(dim, _TARGET_TILE)


def _tile_k(padded):
    return padded if padded <= _MAX_SINGLE_K else _TARGET_TILE


@functools.lru_cache(maxsize=None)
def _vmem_limit_bytes():
    """Generation-aware VMEM budget (~48 MiB on v7x, ~96 MiB on v5e/v6e)."""
    cap = 64 * 2**20
    try:
        info = pltpu.get_tpu_info()
        cap = getattr(info, "vmem_capacity_bytes", None) or cap
    except Exception:
        pass
    return int(min(max(cap * 3 // 4, 32 * 2**20), 112 * 2**20))


# ---------------------------------------------------------------------------
# Kernels
# ---------------------------------------------------------------------------
def _linear_kernel_1k(x_ref, w_ref, b_ref, out_ref, *, activation):
    """Single K step: out = act(x @ w + b); no scratch accumulator."""
    y = jnp.dot(x_ref[...], w_ref[...], preferred_element_type=jnp.float32)
    y = y + b_ref[...]
    if activation == "relu":
        y = jnp.maximum(y, 0.0)
    out_ref[...] = y.astype(out_ref.dtype)


def _linear_kernel_acc(x_ref, w_ref, b_ref, out_ref, acc_ref, *, tile_k, activation):
    """Multi-step K reduction (f32 VMEM accumulator); bias/act fused at the end.

    x_ref holds the full (tile_m, K) activation block (resident across j, k);
    the current K chunk is sliced in-kernel.
    """
    k = pl.program_id(2)
    kk = pl.multiple_of(k * tile_k, tile_k)
    prod = jnp.dot(x_ref[:, pl.ds(kk, tile_k)], w_ref[...],
                   preferred_element_type=jnp.float32)

    @pl.when(k == 0)
    def _():
        acc_ref[...] = prod          # direct write: no zero-fill + add pass

    @pl.when(k != 0)
    def _():
        acc_ref[...] += prod

    @pl.when(k == pl.num_programs(2) - 1)
    def _():
        y = acc_ref[...] + b_ref[...]
        if activation == "relu":
            y = jnp.maximum(y, 0.0)
        out_ref[...] = y.astype(out_ref.dtype)


def _linear(x, w, b, *, tile_m, activation=None, out_dtype=jnp.float32):
    """Tiled y = act(x @ w + b).  x:(M,K) bf16, w:(K,N) bf16, b:(1,N) f32.

    All dims are already padded: M % tile_m == 0, K/N follow the _pad_* policy.
    """
    M, K = x.shape
    Kw, N = w.shape
    assert K == Kw and b.shape == (1, N)
    assert M % tile_m == 0
    tn, tk = _tile_n(N), _tile_k(K)
    assert N % tn == 0 and K % tk == 0
    n_m, n_n, n_k = M // tile_m, N // tn, K // tk
    vmem_limit = _vmem_limit_bytes()

    if n_k == 1:
        return pl.pallas_call(
            functools.partial(_linear_kernel_1k, activation=activation),
            out_shape=jax.ShapeDtypeStruct((M, N), out_dtype),
            grid_spec=pltpu.PrefetchScalarGridSpec(
                num_scalar_prefetch=0,
                grid=(n_m, n_n),
                in_specs=[
                    pl.BlockSpec((tile_m, K), lambda i, j: (i, 0)),
                    pl.BlockSpec((K, tn), lambda i, j: (0, j)),
                    pl.BlockSpec((1, tn), lambda i, j: (0, j)),
                ],
                out_specs=pl.BlockSpec((tile_m, tn), lambda i, j: (i, j)),
            ),
            compiler_params=pltpu.CompilerParams(
                dimension_semantics=("parallel", "parallel"),
                vmem_limit_bytes=vmem_limit,
            ),
        )(x, w, b)

    return pl.pallas_call(
        functools.partial(_linear_kernel_acc, tile_k=tk, activation=activation),
        out_shape=jax.ShapeDtypeStruct((M, N), out_dtype),
        grid_spec=pltpu.PrefetchScalarGridSpec(
            num_scalar_prefetch=0,
            grid=(n_m, n_n, n_k),
            in_specs=[
                # activations: resident across (j, k); re-DMA'd only when the
                # M tile changes.
                pl.BlockSpec((tile_m, K), lambda i, j, k: (i, 0)),
                # weights: streamed (double-buffered) per (k, j) tile.
                pl.BlockSpec((tk, tn), lambda i, j, k: (k, j)),
                # bias: index constant across k -> Pallas reuses the DMA'd tile.
                pl.BlockSpec((1, tn), lambda i, j, k: (0, j)),
            ],
            out_specs=pl.BlockSpec((tile_m, tn), lambda i, j, k: (i, j)),
            scratch_shapes=[pltpu.VMEM((tile_m, tn), jnp.float32)],
        ),
        compiler_params=pltpu.CompilerParams(
            dimension_semantics=("parallel", "parallel", "arbitrary"),
            vmem_limit_bytes=vmem_limit,
        ),
    )(x, w, b)


# ---------------------------------------------------------------------------
# Model
# ---------------------------------------------------------------------------
def prepare_params(w1, b1, w2, b2):
    """One-time: cast Linear weights to bf16 and zero-pad to tile-friendly
    shapes.  Done outside the forward so the hot path streams pure bf16."""
    in_dim, hidden = w1.shape
    hid2, vocab = w2.shape
    assert hid2 == hidden and b1.shape == (hidden,) and b2.shape == (vocab,)
    in_p = _pad_k(in_dim)
    hid_p = _pad_n(hidden)     # N of fc1; also K of fc2 (tile policies agree)
    voc_p = _pad_n(vocab)
    bf16, f32 = jnp.bfloat16, jnp.float32
    w1_p = jnp.zeros((in_p, hid_p), bf16).at[:in_dim, :hidden].set(w1.astype(bf16))
    b1_p = jnp.zeros((1, hid_p), f32).at[:, :hidden].set(b1.reshape(1, -1).astype(f32))
    w2_p = jnp.zeros((hid_p, voc_p), bf16).at[:hidden, :vocab].set(w2.astype(bf16))
    b2_p = jnp.zeros((1, voc_p), f32).at[:, :vocab].set(b2.reshape(1, -1).astype(f32))
    return w1_p, b1_p, w2_p, b2_p


def ffnlm_forward(x_tokens, embed_table, w1_p, b1_p, w2_p, b2_p):
    """x_tokens: (B, context) int32.  Weights pre-padded via prepare_params.
    Returns (B, vocab) f32 logits."""
    B, context = x_tokens.shape
    vocab, embed_dim = embed_table.shape
    in_dim = context * embed_dim
    in_p = w1_p.shape[0]
    assert in_p == _pad_k(in_dim)

    # Embedding lookup + flatten (matches torch: embed(x).view(B, -1)).
    # TODO(synk): fuse this gather into the fc1 kernel via a
    # PrefetchScalarGridSpec row-gather once B*context*embed_dim is large
    # enough for the extra HBM round trip to matter.
    flat = jnp.take(embed_table, x_tokens.reshape(-1), axis=0).reshape(B, in_dim)

    # Pad batch; tile it once it is large so accumulator/output blocks stay bounded.
    if B > 256:
        tile_m = 256
        M_p = _round_up(B, tile_m)
    else:
        M_p = _round_up(B, 8)
        tile_m = M_p
    flat_p = (jnp.zeros((M_p, in_p), jnp.bfloat16)
              .at[:B, :in_dim].set(flat.astype(jnp.bfloat16)))

    # fc1 + ReLU (hidden kept in bf16 for the fc2 MXU / weight stream).
    h = _linear(flat_p, w1_p, b1_p, tile_m=tile_m,
                activation="relu", out_dtype=jnp.bfloat16)
    # fc2 -> logits in f32 over the (padded) vocab axis.
    # TODO(synk): emit bf16 logits on v5e if the consumer allows (halves the store).
    logits_p = _linear(h, w2_p, b2_p, tile_m=tile_m,
                       activation=None, out_dtype=jnp.float32)
    return logits_p[:B, :vocab]


def init_params(key, vocab_size, embed_dim, context_size, hidden_dim):
    """Deterministic synthetic parameters (shapes match the torch module)."""
    k_emb, k_w1, k_b1, k_w2, k_b2 = jax.random.split(key, 5)
    in1 = context_size * embed_dim
    embed_table = jax.random.normal(k_emb, (vocab_size, embed_dim), jnp.float32)
    # torch Linear stores (out, in); we store the transpose (in, out) for x @ W.
    w1 = jax.random.normal(k_w1, (in1, hidden_dim), jnp.float32) * (1.0 / jnp.sqrt(in1))
    b1 = jax.random.normal(k_b1, (hidden_dim,), jnp.float32) * 0.01
    w2 = jax.random.normal(k_w2, (hidden_dim, vocab_size), jnp.float32) * (1.0 / jnp.sqrt(hidden_dim))
    b2 = jax.random.normal(k_b2, (vocab_size,), jnp.float32) * 0.01
    return embed_table, w1, b1, w2, b2


def _reference(x, embed_table, w1, b1, w2, b2):
    """Pure-JAX reference with the same bf16-weight / f32-accumulate numerics."""
    bf16 = jnp.bfloat16
    B = x.shape[0]
    flat = jnp.take(embed_table, x.reshape(-1), axis=0).reshape(B, -1)
    h = jnp.maximum(jnp.dot(flat.astype(bf16), w1.astype(bf16),
                            preferred_element_type=jnp.float32) + b1, 0.0)
    return jnp.dot(h.astype(bf16), w2.astype(bf16),
                   preferred_element_type=jnp.float32) + b2


def _run_case(key, vocab_size, embed_dim, context_size, hidden_dim, batch, tol):
    k_params, k_x = jax.random.split(key)
    embed_table, w1, b1, w2, b2 = init_params(
        k_params, vocab_size, embed_dim, context_size, hidden_dim)
    w1_p, b1_p, w2_p, b2_p = prepare_params(w1, b1, w2, b2)
    x = jax.random.randint(k_x, (batch, context_size), 0, vocab_size, dtype=jnp.int32)

    fwd = jax.jit(ffnlm_forward)
    logits = jax.block_until_ready(fwd(x, embed_table, w1_p, b1_p, w2_p, b2_p))

    ref = _reference(x, embed_table, w1, b1, w2, b2)
    assert logits.shape == (batch, vocab_size)
    assert jnp.allclose(logits, ref, atol=tol, rtol=tol), (
        float(jnp.max(jnp.abs(logits - ref))))


if __name__ == "__main__":
    key = jax.random.PRNGKey(0)
    k1, k2 = jax.random.split(key)

    # Case 1: toy shapes (single-K-step kernel path, single N tile).
    _run_case(k1, vocab_size=32, embed_dim=8, context_size=4, hidden_dim=32,
              batch=8, tol=1e-2)

    # Case 2: slightly larger shapes exercising the multi-K-step accumulator
    # path (in_dim=1536 -> 3 K tiles) and multiple parallel N tiles (vocab=384
    # -> 2 x 256 tiles).
    _run_case(k2, vocab_size=384, embed_dim=96, context_size=16, hidden_dim=48,
              batch=16, tol=3e-2)

    print("KERNEL_OK")
</pallas_src>

<mosaic_0001>
module attributes {stable_mosaic.version = 11 : i64} {
  func.func @_linear_kernel_1k(%arg0: i32, %arg1: i32, %arg2: memref<8x128xbf16, #tpu.memory_space<vmem>>, %arg3: memref<128x128xbf16, #tpu.memory_space<vmem>>, %arg4: memref<1x128xf32, #tpu.memory_space<vmem>>, %arg5: memref<8x128xbf16, #tpu.memory_space<vmem>>) attributes {dimension_semantics = [#tpu.dimension_semantics<parallel>, #tpu.dimension_semantics<parallel>], iteration_bounds = array<i64: 1, 1>, scalar_prefetch = 0 : i64, scratch_operands = 0 : i64, tpu.core_type = #tpu.core_type<tc>, window_params = [{transform_indices = @transform_0, window_bounds = array<i64: 8, 128>}, {transform_indices = @transform_1, window_bounds = array<i64: 128, 128>}, {transform_indices = @transform_2, window_bounds = array<i64: 1, 128>}, {transform_indices = @transform_3, window_bounds = array<i64: 8, 128>}]} {
    %c0 = arith.constant 0 : index
    %c0_0 = arith.constant 0 : index
    %0 = vector.load %arg2[%c0, %c0_0] : memref<8x128xbf16, #tpu.memory_space<vmem>>, vector<8x128xbf16>
    %c0_1 = arith.constant 0 : index
    %c0_2 = arith.constant 0 : index
    %1 = vector.load %arg3[%c0_1, %c0_2] : memref<128x128xbf16, #tpu.memory_space<vmem>>, vector<128x128xbf16>
    %cst = arith.constant dense<0.000000e+00> : vector<8x128xf32>
    %2 = tpu.matmul %0, %1, %cst {dimension_numbers = #tpu.dot_dimension_numbers<[1], [0], [0], [1], [0, 0, 1, 1], [], []>} : vector<8x128xbf16>, vector<128x128xbf16>, vector<8x128xf32> -> vector<8x128xf32>
    %c0_3 = arith.constant 0 : index
    %c0_4 = arith.constant 0 : index
    %3 = vector.load %arg4[%c0_3, %c0_4] : memref<1x128xf32, #tpu.memory_space<vmem>>, vector<1x128xf32>
    %4 = vector.broadcast %3 : vector<1x128xf32> to vector<8x128xf32>
    %5 = arith.addf %2, %4 : vector<8x128xf32>
    %cst_5 = arith.constant 0.000000e+00 : f32
    %6 = vector.broadcast %cst_5 : f32 to vector<8x128xf32>
    %7 = arith.maximumf %5, %6 : vector<8x128xf32>
    %8 = arith.truncf %7 : vector<8x128xf32> to vector<8x128xbf16>
    %c0_6 = arith.constant 0 : index
    %c0_7 = arith.constant 0 : index
    %9 = vector.load %arg5[%c0_6, %c0_7] : memref<8x128xbf16, #tpu.memory_space<vmem>>, vector<8x128xbf16>
    tpu.vector_store %arg5[%c0_6, %c0_7], %8 {strides = array<i32>} : memref<8x128xbf16, #tpu.memory_space<vmem>>, vector<8x128xbf16>,
    return
  }
  func.func @transform_0(%arg0: i32, %arg1: i32) -> (i32, i32) {
    %c0_i32 = arith.constant 0 : i32
    %c0_i32_0 = arith.constant 0 : i32
    return %arg0, %c0_i32 : i32, i32
  }
  func.func @transform_1(%arg0: i32, %arg1: i32) -> (i32, i32) {
    %c0_i32 = arith.constant 0 : i32
    %c0_i32_0 = arith.constant 0 : i32
    return %c0_i32, %arg1 : i32, i32
  }
  func.func @transform_2(%arg0: i32, %arg1: i32) -> (i32, i32) {
    %c0_i32 = arith.constant 0 : i32
    %c0_i32_0 = arith.constant 0 : i32
    return %c0_i32, %arg1 : i32, i32
  }
  func.func @transform_3(%arg0: i32, %arg1: i32) -> (i32, i32) {
    %c0_i32 = arith.constant 0 : i32
    return %arg0, %arg1 : i32, i32
  }
}

module attributes {stable_mosaic.version = 11 : i64} {
  func.func @_linear_kernel_1k(%arg0: i32, %arg1: i32, %arg2: memref<8x128xbf16, #tpu.memory_space<vmem>>, %arg3: memref<128x128xbf16, #tpu.memory_space<vmem>>, %arg4: memref<1x128xf32, #tpu.memory_space<vmem>>, %arg5: memref<8x128xf32, #tpu.memory_space<vmem>>) attributes {dimension_semantics = [#tpu.dimension_semantics<parallel>, #tpu.dimension_semantics<parallel>], iteration_bounds = array<i64: 1, 1>, scalar_prefetch = 0 : i64, scratch_operands = 0 : i64, tpu.core_type = #tpu.core_type<tc>, window_params = [{transform_indices = @transform_0, window_bounds = array<i64: 8, 128>}, {transform_indices = @transform_1, window_bounds = array<i64: 128, 128>}, {transform_indices = @transform_2, window_bounds = array<i64: 1, 128>}, {transform_indices = @transform_3, window_bounds = array<i64: 8, 128>}]} {
    %c0 = arith.constant 0 : index
    %c0_0 = arith.constant 0 : index
    %0 = vector.load %arg2[%c0, %c0_0] : memref<8x128xbf16, #tpu.memory_space<vmem>>, vector<8x128xbf16>
    %c0_1 = arith.constant 0 : index
    %c0_2 = arith.constant 0 : index
    %1 = vector.load %arg3[%c0_1, %c0_2] : memref<128x128xbf16, #tpu.memory_space<vmem>>, vector<128x128xbf16>
    %cst = arith.constant dense<0.000000e+00> : vector<8x128xf32>
    %2 = tpu.matmul %0, %1, %cst {dimension_numbers = #tpu.dot_dimension_numbers<[1], [0], [0], [1], [0, 0, 1, 1], [], []>} : vector<8x128xbf16>, vector<128x128xbf16>, vector<8x128xf32> -> vector<8x128xf32>
    %c0_3 = arith.constant 0 : index
    %c0_4 = arith.constant 0 : index
    %3 = vector.load %arg4[%c0_3, %c0_4] : memref<1x128xf32, #tpu.memory_space<vmem>>, vector<1x128xf32>
    %4 = vector.broadcast %3 : vector<1x128xf32> to vector<8x128xf32>
    %5 = arith.addf %2, %4 : vector<8x128xf32>
    %c0_5 = arith.constant 0 : index
    %c0_6 = arith.constant 0 : index
    %6 = vector.load %arg5[%c0_5, %c0_6] : memref<8x128xf32, #tpu.memory_space<vmem>>, vector<8x128xf32>
    tpu.vector_store %arg5[%c0_5, %c0_6], %5 {strides = array<i32>} : memref<8x128xf32, #tpu.memory_space<vmem>>, vector<8x128xf32>,
    return
  }
  func.func @transform_0(%arg0: i32, %arg1: i32) -> (i32, i32) {
    %c0_i32 = arith.constant 0 : i32
    %c0_i32_0 = arith.constant 0 : i32
    return %arg0, %c0_i32 : i32, i32
  }
  func.func @transform_1(%arg0: i32, %arg1: i32) -> (i32, i32) {
    %c0_i32 = arith.constant 0 : i32
    %c0_i32_0 = arith.constant 0 : i32
    return %c0_i32, %arg1 : i32, i32
  }
  func.func @transform_2(%arg0: i32, %arg1: i32) -> (i32, i32) {
    %c0_i32 = arith.constant 0 : i32
    %c0_i32_0 = arith.constant 0 : i32
    return %c0_i32, %arg1 : i32, i32
  }
  func.func @transform_3(%arg0: i32, %arg1: i32) -> (i32, i32) {
    %c0_i32 = arith.constant 0 : i32
    return %arg0, %arg1 : i32, i32
  }
}

</mosaic_0001>

<llo_original>
// kernel: ffnlm_forward.2
$region0: #{ffnlm_forward.2}
  #allocation0 [shape = 'u32[]', space=smem, size = 0x4, offset = 0x4, fixed_abs, tag = 'smem constant byte address 0x4 - core index']
  #allocation1 [shape = 'u32[72,128]{1,0:T(1,128)}', space=vmem, size = 0x9000, scoped, tag = 'internal scratch']
  %s0 = inlined_call_operand.vmem [shape: bf16[8,128], index: 0, kind: input, shape index: {}]
  %s1 = inlined_call_operand.vmem [shape: bf16[128,128], index: 1, kind: input, shape index: {}]
  %s2 = inlined_call_operand.vmem [shape: f32[1,128], index: 2, kind: input, shape index: {}]
  %s3 = inlined_call_operand.vmem [shape: bf16[8,128], index: 3, kind: output, shape index: {}]
  %s4 = sld [smem:[#allocation0]]
  $region22: #{ffnlm_forward.2} parent=0
    _
  %s6 = ssub.s32 1, %s4
  %s7 = scalar_select 0, %s6, %s4
  // Predicated region
  $region2: #{ffnlm_forward.2} parent=0 // pred_check
    _
  $region3: #{ffnlm_forward.2} parent=0 // pred_check_branch
    %9 = sbr.rel (0) target = $region5
  $region4: #{ffnlm_forward.2} parent=0 // pred_region
    _
  $region5: #{ffnlm_forward.2} parent=0 // pred_fallthru
    _
  // Predicated region
  $region6: #{ffnlm_forward.2} parent=0 // pred_check
    _
  $region7: #{ffnlm_forward.2} parent=0 // pred_check_branch
    %11 = sbr.rel (0) target = $region9
  $region8: #{ffnlm_forward.2} parent=0 // pred_region
    _
  $region9: #{ffnlm_forward.2} parent=0 // pred_fallthru
    _
  // Predicated region
  $region10: #{ffnlm_forward.2} parent=0 // pred_check
    _
  $region11: #{ffnlm_forward.2} parent=0 // pred_check_branch
    %13 = sbr.rel (0) target = $region13
  $region12: #{ffnlm_forward.2} parent=0 // pred_region
    _
  $region13: #{ffnlm_forward.2} parent=0 // pred_fallthru
    _
  %v14 = vld [vmem:[%s0] sm:$0xf]
  %v15 = vld [vmem:[%s1] sm:$0xf]
  %v16 = vld [vmem:[%s1 + $0x4] sm:$0xf]
  %v17 = vld [vmem:[%s1 + $0x8] sm:$0xf]
  %v18 = vld [vmem:[%s1 + $0xc] sm:$0xf]
  %v19 = vld [vmem:[%s1 + $0x10] sm:$0xf]
  %v20 = vld [vmem:[%s1 + $0x14] sm:$0xf]
  %v21 = vld [vmem:[%s1 + $0x18] sm:$0xf]
  %v22 = vld [vmem:[%s1 + $0x1c] sm:$0xf]
  %v23 = vld [vmem:[%s1 + $0x20] sm:$0xf]
  %v24 = vld [vmem:[%s1 + $0x24] sm:$0xf]
  %v25 = vld [vmem:[%s1 + $0x28] sm:$0xf]
  %v26 = vld [vmem:[%s1 + $0x2c] sm:$0xf]
  %v27 = vld [vmem:[%s1 + $0x30] sm:$0xf]
  %v28 = vld [vmem:[%s1 + $0x34] sm:$0xf]
  %v29 = vld [vmem:[%s1 + $0x38] sm:$0xf]
  %v30 = vld [vmem:[%s1 + $0x3c] sm:$0xf]
  %v31 = vld [vmem:[%s2] sm:$0x1]
  %v33 = vperm.slane %v31, 0
  %v51 = vunpack.c.l.b16 %v15
  %v52 = vunpack.c.l.b16 %v16
  %v53 = vunpack.c.l.b16 %v17
  %v54 = vunpack.c.l.b16 %v18
  %v55 = vunpack.c.l.b16 %v19
  %v56 = vunpack.c.l.b16 %v20
  %v57 = vunpack.c.l.b16 %v21
  %v58 = vunpack.c.l.b16 %v22
  %v59 = vunpack.c.l.b16 %v23
  %v60 = vunpack.c.l.b16 %v24
  %v61 = vunpack.c.l.b16 %v25
  %v62 = vunpack.c.l.b16 %v26
  %v63 = vunpack.c.l.b16 %v27
  %v64 = vunpack.c.l.b16 %v28
  %v65 = vunpack.c.l.b16 %v29
  %v66 = vunpack.c.l.b16 %v30
  %v67 = vpack.c.b16 %v52, %v51
  %v68 = vpack.c.b16 %v54, %v53
  %v69 = vpack.c.b16 %v56, %v55
  %v70 = vpack.c.b16 %v58, %v57
  %v71 = vpack.c.b16 %v60, %v59
  %v72 = vpack.c.b16 %v62, %v61
  %v73 = vpack.c.b16 %v64, %v63
  %v74 = vpack.c.b16 %v66, %v65
  %83 = vmatpush.bf16.msra.mxu0 %v74
  %84 = vmatpush.bf16.msra.mxu0 %v73
  %85 = vmatpush.bf16.msra.mxu0 %v72
  %86 = vmatpush.bf16.msra.mxu0 %v71
  %87 = vmatpush.bf16.msra.mxu0 %v70
  %88 = vmatpush.bf16.msra.mxu0 %v69
  %89 = vmatpush.bf16.msra.mxu0 %v68
  %90 = vmatpush.bf16.msra.mxu0 %v67
  %91 = vmatmul.bf16.gmra.mxu0 %v14
  %v92 = vpop.f32.mrf.mxu0
  %v93 = vadd.f32 %v33, %v92
  %v94 = vpop.f32.mrf.mxu0
  %95 = vdwg.mxu0
  %v96 = vmax.f32 %v93, 0.0
  %v97 = vpack.c.bf16 %v96, %v96
  %98 = vst [vmem:[%s3] sm:$0xf] %v97
  // Predicated region
  $region14: #{ffnlm_forward.2} parent=0 // pred_check
    _
  $region15: #{ffnlm_forward.2} parent=0 // pred_check_branch
    %100 = sbr.rel (0) target = $region17
  $region16: #{ffnlm_forward.2} parent=0 // pred_region
    _
  $region17: #{ffnlm_forward.2} parent=0 // pred_fallthru
    _
  // Predicated region
  $region18: #{ffnlm_forward.2} parent=0 // pred_check
    _
  $region19: #{ffnlm_forward.2} parent=0 // pred_check_branch
    %102 = sbr.rel (0) target = $region21
  $region20: #{ffnlm_forward.2} parent=0 // pred_region
    _
  $region21: #{ffnlm_forward.2} parent=0 // pred_fallthru
    _

// kernel: ffnlm_forward.3
$region0: #{ffnlm_forward.3}
  #allocation0 [shape = 'u32[]', space=smem, size = 0x4, offset = 0x4, fixed_abs, tag = 'smem constant byte address 0x4 - core index']
  #allocation1 [shape = 'u32[72,128]{1,0:T(1,128)}', space=vmem, size = 0x9000, scoped, tag = 'internal scratch']
  %s0 = inlined_call_operand.vmem [shape: bf16[8,128], index: 0, kind: input, shape index: {}]
  %s1 = inlined_call_operand.vmem [shape: bf16[128,128], index: 1, kind: input, shape index: {}]
  %s2 = inlined_call_operand.vmem [shape: f32[1,128], index: 2, kind: input, shape index: {}]
  %s3 = inlined_call_operand.hbm [shape: f32[8,128], index: 3, kind: output, shape index: {}]
  %s4 = sld [smem:[#allocation0]]
  $region22: #{ffnlm_forward.3} parent=0
    _
  %s6 = ssub.s32 1, %s4
  %s7 = scalar_select 0, %s6, %s4
  $region1: #{ffnlm_forward.3} parent=0
    #allocation2 [shape = 'u8[4096]{0}', space=vmem, size = 0x1000, scoped, tag = 'output window, operand 0, single buffered']
    #allocation3 [shape = 's32[1]{0}', space=sflag, size = 0x4, scoped, tag = 'scoped memory for ffnlm_forward.3']
    %8 = vsyncpa [#allocation3], 0
    // Predicated region
    $region2: #{ffnlm_forward.3} parent=1 // pred_check
      _
    $region3: #{ffnlm_forward.3} parent=1 // pred_check_branch
      %10 = sbr.rel (0) target = $region5
    $region4: #{ffnlm_forward.3} parent=1 // pred_region
      _
    $region5: #{ffnlm_forward.3} parent=1 // pred_fallthru
      _
    // Predicated region
    $region6: #{ffnlm_forward.3} parent=1 // pred_check
      _
    $region7: #{ffnlm_forward.3} parent=1 // pred_check_branch
      %12 = sbr.rel (0) target = $region9
    $region8: #{ffnlm_forward.3} parent=1 // pred_region
      _
    $region9: #{ffnlm_forward.3} parent=1 // pred_fallthru
      _
    // Predicated region
    $region10: #{ffnlm_forward.3} parent=1 // pred_check
      _
    $region11: #{ffnlm_forward.3} parent=1 // pred_check_branch
      %14 = sbr.rel (0) target = $region13
    $region12: #{ffnlm_forward.3} parent=1 // pred_region
      _
    $region13: #{ffnlm_forward.3} parent=1 // pred_fallthru
      _
    %v15 = vld [vmem:[%s0] sm:$0xf]
    %v16 = vld [vmem:[%s1] sm:$0xf]
    %v17 = vld [vmem:[%s1 + $0x4] sm:$0xf]
    %v18 = vld [vmem:[%s1 + $0x8] sm:$0xf]
    %v19 = vld [vmem:[%s1 + $0xc] sm:$0xf]
    %v20 = vld [vmem:[%s1 + $0x10] sm:$0xf]
    %v21 = vld [vmem:[%s1 + $0x14] sm:$0xf]
    %v22 = vld [vmem:[%s1 + $0x18] sm:$0xf]
    %v23 = vld [vmem:[%s1 + $0x1c] sm:$0xf]
    %v24 = vld [vmem:[%s1 + $0x20] sm:$0xf]
    %v25 = vld [vmem:[%s1 + $0x24] sm:$0xf]
    %v26 = vld [vmem:[%s1 + $0x28] sm:$0xf]
    %v27 = vld [vmem:[%s1 + $0x2c] sm:$0xf]
    %v28 = vld [vmem:[%s1 + $0x30] sm:$0xf]
    %v29 = vld [vmem:[%s1 + $0x34] sm:$0xf]
    %v30 = vld [vmem:[%s1 + $0x38] sm:$0xf]
    %v31 = vld [vmem:[%s1 + $0x3c] sm:$0xf]
    %v32 = vld [vmem:[%s2] sm:$0x1]
    %v34 = vperm.slane %v32, 0
    %v52 = vunpack.c.l.b16 %v16
    %v53 = vunpack.c.l.b16 %v17
    %v54 = vunpack.c.l.b16 %v18
    %v55 = vunpack.c.l.b16 %v19
    %v56 = vunpack.c.l.b16 %v20
    %v57 = vunpack.c.l.b16 %v21
    %v58 = vunpack.c.l.b16 %v22
    %v59 = vunpack.c.l.b16 %v23
    %v60 = vunpack.c.l.b16 %v24
    %v61 = vunpack.c.l.b16 %v25
    %v62 = vunpack.c.l.b16 %v26
    %v63 = vunpack.c.l.b16 %v27
    %v64 = vunpack.c.l.b16 %v28
    %v65 = vunpack.c.l.b16 %v29
    %v66 = vunpack.c.l.b16 %v30
    %v67 = vunpack.c.l.b16 %v31
    %v68 = vpack.c.b16 %v53, %v52
    %v69 = vpack.c.b16 %v55, %v54
    %v70 = vpack.c.b16 %v57, %v56
    %v71 = vpack.c.b16 %v59, %v58
    %v72 = vpack.c.b16 %v61, %v60
    %v73 = vpack.c.b16 %v63, %v62
    %v74 = vpack.c.b16 %v65, %v64
    %v75 = vpack.c.b16 %v67, %v66
    %84 = vmatpush.bf16.msra.mxu0 %v75
    %85 = vmatpush.bf16.msra.mxu0 %v74
    %86 = vmatpush.bf16.msra.mxu0 %v73
    %87 = vmatpush.bf16.msra.mxu0 %v72
    %88 = vmatpush.bf16.msra.mxu0 %v71
    %89 = vmatpush.bf16.msra.mxu0 %v70
    %90 = vmatpush.bf16.msra.mxu0 %v69
    %91 = vmatpush.bf16.msra.mxu0 %v68
    %92 = vmatmul.bf16.gmra.mxu0 %v15
    %v93 = vpop.f32.mrf.mxu0
    %v94 = vadd.f32 %v34, %v93
    %v95 = vpop.f32.mrf.mxu0
    %96 = vdwg.mxu0
    %97 = vst [vmem:[#allocation2] sm:$0xff] %v94
    // Predicated region
    $region14: #{ffnlm_forward.3} parent=1 // pred_check
      _
    $region15: #{ffnlm_forward.3} parent=1 // pred_check_branch
      %99 = sbr.rel (0) target = $region17
    $region16: #{ffnlm_forward.3} parent=1 // pred_region
      %101 = vsyncadd [#allocation3], 0
      %s103 = sshll.u32 [#allocation2], 4
      %s104 = int_to_ptr.vmem [resolvable:$true] %s103
      %s105 = sshll.u32 %s3, 4
      %s106 = int_to_ptr.hbm [resolvable:$true] %s105
      %108 = dma.vmem_to_hbm [thread:$0]  %s104, 128, %s106, [#allocation3]
    $region17: #{ffnlm_forward.3} parent=1 // pred_fallthru
      _
    // Predicated region
    $region18: #{ffnlm_forward.3} parent=1 // pred_check
      _
    $region19: #{ffnlm_forward.3} parent=1 // pred_check_branch
      %110 = sbr.rel (0) target = $region21
    $region20: #{ffnlm_forward.3} parent=1 // pred_region
      %112 = dma.done [#allocation3], 128
    $region21: #{ffnlm_forward.3} parent=1 // pred_fallthru
      _
    %113 = vsyncpa [#allocation3], 1

</llo_original>
